<compile_context>
chip_gen: v7x
topology: tpu7x:2x2x1
jax: 0.10.0
libtpu: 0.0.40
codegen_flags: <defaults>
</compile_context>

<pallas_src>
import math

import jax
import jax.numpy as jnp
from jax.experimental import pallas as pl
from jax.experimental.pallas import tpu as pltpu

_BN_EPS = 1e-5
_VMEM_LIMIT = 48 * 1024 * 1024


# ----------------------------------------------------------------------------
# Tiled matmul kernel: C = act(A @ B + bias), bf16 operands, f32 accumulation
# ----------------------------------------------------------------------------
def _round_up(x, m):
    return (x + m - 1) // m * m


def _choose_tile(dim, prefs, full_cap):
    """Pick a tile that divides `dim`, else use a full-extent block (or pad)."""
    for p in prefs:
        if dim % p == 0:
            return p, dim
    if dim <= full_cap:
        return dim, dim
    return prefs[-1], _round_up(dim, prefs[-1])


def _matmul_kernel(activation):
    def kernel(a_ref, b_ref, bias_ref, o_ref, acc_ref):
        @pl.when(pl.program_id(2) == 0)
        def _():
            acc_ref[...] = jnp.zeros_like(acc_ref)

        acc_ref[...] += jnp.dot(a_ref[...], b_ref[...],
                                preferred_element_type=jnp.float32)

        @pl.when(pl.program_id(2) == pl.num_programs(2) - 1)
        def _():
            r = acc_ref[...] + bias_ref[...]
            if activation == "relu":
                r = jnp.maximum(r, 0.0)
            elif activation == "sigmoid":
                r = jax.nn.sigmoid(r)
            elif activation == "silu":
                r = r * jax.nn.sigmoid(r)
            elif activation == "softplus":
                r = jnp.where(r > 30.0, r,
                              jnp.log(1.0 + jnp.exp(jnp.minimum(r, 30.0))))
            o_ref[...] = r.astype(o_ref.dtype)

    return kernel


def pallas_matmul(a, b, bias=None, activation=None, out_dtype=jnp.bfloat16):
    """a: (M, K), b: (K, N), bias: (N,) f32 -> (M, N) out_dtype."""
    M, K = a.shape
    K2, N = b.shape
    assert K == K2
    a = a.astype(jnp.bfloat16)
    b = b.astype(jnp.bfloat16)

    # Tiny alignment pads only (e.g. K=27 -> 32); no full 128-padding copies.
    M8, K8 = _round_up(M, 8), _round_up(K, 8)
    tm, Mp = _choose_tile(M8, (256, 128, 64, 32, 16, 8), 512)
    tk, Kp = _choose_tile(K8, (512, 256, 128), 4096)
    tn, Np = _choose_tile(N, (256, 128), 512)

    if (Mp, Kp) != (M, K):
        a = jnp.pad(a, ((0, Mp - M), (0, Kp - K)))
    if (Kp, Np) != (K, N):
        b = jnp.pad(b, ((0, Kp - K), (0, Np - N)))
    if bias is None:
        bias_p = jnp.zeros((1, Np), jnp.float32)
    else:
        bias_p = bias.astype(jnp.float32).reshape(1, N)
        if Np != N:
            bias_p = jnp.pad(bias_p, ((0, 0), (0, Np - N)))

    grid = (Mp // tm, Np // tn, Kp // tk)
    out = pl.pallas_call(
        _matmul_kernel(activation),
        out_shape=jax.ShapeDtypeStruct((Mp, Np), out_dtype),
        grid_spec=pltpu.PrefetchScalarGridSpec(
            num_scalar_prefetch=0,
            grid=grid,
            in_specs=[
                pl.BlockSpec((tm, tk), lambda i, j, k: (i, k)),
                pl.BlockSpec((tk, tn), lambda i, j, k: (k, j)),
                pl.BlockSpec((1, tn), lambda i, j, k: (0, j)),
            ],
            out_specs=pl.BlockSpec((tm, tn), lambda i, j, k: (i, j)),
            scratch_shapes=[pltpu.VMEM((tm, tn), jnp.float32)],
        ),
        compiler_params=pltpu.CompilerParams(
            dimension_semantics=("parallel", "parallel", "arbitrary"),
            vmem_limit_bytes=_VMEM_LIMIT),
    )(a, b, bias_p)
    if (Mp, Np) != (M, N):
        out = out[:M, :N]
    return out


# ----------------------------------------------------------------------------
# Conv / pooling / resize helpers (NHWC) built on the Pallas matmul
# ----------------------------------------------------------------------------
def conv3x3(x, w_kc, b, activation=None, out_dtype=jnp.bfloat16):
    """x: (B, H, W, Cin) bf16; w_kc: (9*Cin, Cout) bf16 (tap-major layout)."""
    B, H, W, C = x.shape
    xp = jnp.pad(x, ((0, 0), (1, 1), (1, 1), (0, 0)))
    # TODO(synk): im2col patches are still materialized in HBM (9x A traffic);
    # fusing the 9 taps into the matmul K axis needs halo/Element indexing.
    cols = [xp[:, dh:dh + H, dw:dw + W, :] for dh in range(3) for dw in range(3)]
    patches = jnp.concatenate(cols, axis=-1).reshape(B * H * W, 9 * C)
    out = pallas_matmul(patches, w_kc, bias=b, activation=activation,
                        out_dtype=out_dtype)
    return out.reshape(B, H, W, -1)


def conv1x1(x, w, b, activation=None, out_dtype=jnp.bfloat16):
    B, H, W, C = x.shape
    out = pallas_matmul(x.reshape(B * H * W, C), w, bias=b,
                        activation=activation, out_dtype=out_dtype)
    return out.reshape(B, H, W, -1)


def conv_transpose_2x2(x, w_kc, b4):
    """stride-2 2x2 transposed conv == matmul + pixel-shuffle (NHWC)."""
    B, H, W, C = x.shape
    Cout = w_kc.shape[1] // 4
    out = pallas_matmul(x.reshape(B * H * W, C), w_kc, bias=b4)
    out = out.reshape(B, H, W, 2, 2, Cout).transpose(0, 1, 3, 2, 4, 5)
    return out.reshape(B, 2 * H, 2 * W, Cout)


def cbr(x, p):
    """Conv3x3 + BatchNorm(eval, folded at init) + ReLU."""
    return conv3x3(x, p["w"], p["b"], activation="relu")


def max_pool2(x):
    B, H, W, C = x.shape
    return x.reshape(B, H // 2, 2, W // 2, 2, C).max(axis=(2, 4))


def upsample_bilinear(x, hw):
    B, _, _, C = x.shape
    y = jax.image.resize(x.astype(jnp.float32), (B, hw[0], hw[1], C),
                         method="bilinear")
    return y.astype(x.dtype)


# ----------------------------------------------------------------------------
# Fused SE block kernel: fc1 -> ReLU -> fc2 -> sigmoid (single pallas_call)
# ----------------------------------------------------------------------------
def _se_kernel(y_ref, w1_ref, w2_ref, o_ref):
    h = jnp.dot(y_ref[...], w1_ref[...], preferred_element_type=jnp.float32)
    h = jnp.maximum(h, 0.0).astype(w2_ref.dtype)
    s = jnp.dot(h, w2_ref[...], preferred_element_type=jnp.float32)
    o_ref[...] = jax.nn.sigmoid(s).astype(o_ref.dtype)


def se_fc(y, w1, w2):
    B, C = y.shape
    Cr = w1.shape[1]
    return pl.pallas_call(
        _se_kernel,
        out_shape=jax.ShapeDtypeStruct((B, C), jnp.bfloat16),
        grid_spec=pltpu.PrefetchScalarGridSpec(
            num_scalar_prefetch=0,
            grid=(1,),
            in_specs=[pl.BlockSpec((B, C), lambda i: (0, 0)),
                      pl.BlockSpec((C, Cr), lambda i: (0, 0)),
                      pl.BlockSpec((Cr, C), lambda i: (0, 0))],
            out_specs=pl.BlockSpec((B, C), lambda i: (0, 0)),
        ),
    )(y, w1, w2)


def se_block(x, p):
    B, H, W, C = x.shape
    y = jnp.mean(x.astype(jnp.float32), axis=(1, 2)).astype(jnp.bfloat16)
    s = se_fc(y, p["w1"], p["w2"])
    return x * s[:, None, None, :]


# ----------------------------------------------------------------------------
# Mamba selective scan kernel: h lives in VMEM, deltaA/deltaBu built per step,
# D-skip + SiLU(z) gating fused in the epilogue.
# ----------------------------------------------------------------------------
def _scan_kernel(delta_ref, xc_ref, z_ref, bt_ref, ct_ref, at_ref, d_ref,
                 o_ref, h_ref):
    @pl.when(pl.program_id(1) == 0)
    def _():
        h_ref[...] = jnp.zeros_like(h_ref)

    TL = delta_ref.shape[0]
    A_T = at_ref[...]                                 # (ds, di)
    BT = bt_ref[...]                                  # (ds, TL)
    CT = ct_ref[...]                                  # (ds, TL)
    lane = jax.lax.broadcasted_iota(jnp.int32, (1, TL), 1)

    def step(t, h):
        sel = (lane == t).astype(jnp.float32)                      # (1, TL)
        b_col = jnp.sum(BT * sel, axis=1, keepdims=True)           # (ds, 1)
        c_col = jnp.sum(CT * sel, axis=1, keepdims=True)           # (ds, 1)
        d_row = delta_ref[pl.ds(t, 1), :]                          # (1, di)
        u_row = xc_ref[pl.ds(t, 1), :]                             # (1, di)
        dA = jnp.exp(A_T * d_row)                                  # (ds, di)
        h = dA * h + b_col * (d_row * u_row)
        o_ref[pl.ds(t, 1), :] = jnp.sum(c_col * h, axis=0, keepdims=True)
        return h

    h_ref[...] = jax.lax.fori_loop(0, TL, step, h_ref[...])

    # fused epilogue: y = (scan + D * u) * SiLU(z)
    xc = xc_ref[...]
    z = z_ref[...]
    y = o_ref[...] + xc * d_ref[...]
    o_ref[...] = y * (z * jax.nn.sigmoid(z))


def selective_scan(delta, xc, z, Bm, Cm, A_T, Dvec):
    """delta/xc/z: (B, L, di) f32; Bm/Cm: (B, L, ds); A_T: (ds, di); D: (1, di)."""
    B, L, di = delta.shape
    ds = A_T.shape[0]
    if L % 256 == 0:
        TL = 256
    elif L % 128 == 0:
        TL = 128
    else:
        TL = L
    nchunk = L // TL
    BmT = jnp.swapaxes(Bm, 1, 2).astype(jnp.float32)   # (B, ds, L)
    CmT = jnp.swapaxes(Cm, 1, 2).astype(jnp.float32)

    return pl.pallas_call(
        _scan_kernel,
        out_shape=jax.ShapeDtypeStruct((B, L, di), jnp.float32),
        grid_spec=pltpu.PrefetchScalarGridSpec(
            num_scalar_prefetch=0,
            grid=(B, nchunk),
            in_specs=[
                pl.BlockSpec((None, TL, di), lambda b, c: (b, c, 0)),  # delta
                pl.BlockSpec((None, TL, di), lambda b, c: (b, c, 0)),  # xc
                pl.BlockSpec((None, TL, di), lambda b, c: (b, c, 0)),  # z
                pl.BlockSpec((None, ds, TL), lambda b, c: (b, 0, c)),  # BmT
                pl.BlockSpec((None, ds, TL), lambda b, c: (b, 0, c)),  # CmT
                pl.BlockSpec((ds, di), lambda b, c: (0, 0)),           # A_T
                pl.BlockSpec((1, di), lambda b, c: (0, 0)),            # D
            ],
            out_specs=pl.BlockSpec((None, TL, di), lambda b, c: (b, c, 0)),
            scratch_shapes=[pltpu.VMEM((ds, di), jnp.float32)],
        ),
        compiler_params=pltpu.CompilerParams(
            dimension_semantics=("parallel", "arbitrary"),
            vmem_limit_bytes=_VMEM_LIMIT),
    )(delta.astype(jnp.float32), xc.astype(jnp.float32),
      z.astype(jnp.float32), BmT, CmT, A_T, Dvec)


# ----------------------------------------------------------------------------
# LayerNorm, Mamba, blocks
# ----------------------------------------------------------------------------
def layer_norm(x, gamma, beta, eps=1e-5):
    x = x.astype(jnp.float32)
    mu = jnp.mean(x, axis=-1, keepdims=True)
    var = jnp.mean((x - mu) ** 2, axis=-1, keepdims=True)
    return (x - mu) / jnp.sqrt(var + eps) * gamma + beta


def mamba(x, p):
    """x: (B, L, D) bf16 -> (B, L, D) bf16 (mamba_ssm reference path)."""
    B, L, D = x.shape
    di, ds = p["d_inner"], p["d_state"]
    dconv, dtr = p["d_conv"], p["dt_rank"]

    xz = pallas_matmul(x.reshape(B * L, D), p["in_proj_wT"],
                       out_dtype=jnp.float32).reshape(B, L, 2 * di)
    xc, z = xz[..., :di], xz[..., di:]

    # depthwise causal conv1d along L + SiLU (cheap; stays in JAX)
    # TODO(synk): could be folded into the in_proj epilogue / scan prologue.
    xpad = jnp.pad(xc, ((0, 0), (dconv - 1, 0), (0, 0)))
    acc = jnp.zeros_like(xc)
    for k in range(dconv):
        acc = acc + xpad[:, k:k + L, :] * p["conv_w"][:, k]
    xc = acc + p["conv_b"]
    xc = xc * jax.nn.sigmoid(xc)

    x_dbl = pallas_matmul(xc.astype(jnp.bfloat16).reshape(B * L, di),
                          p["x_proj_wT"], out_dtype=jnp.float32)
    dt = x_dbl[:, :dtr]
    Bm = x_dbl[:, dtr:dtr + ds].reshape(B, L, ds)
    Cm = x_dbl[:, dtr + ds:].reshape(B, L, ds)

    # dt bias + softplus fused into the dt_proj matmul epilogue
    delta = pallas_matmul(dt.astype(jnp.bfloat16), p["dt_proj_wT"],
                          bias=p["dt_proj_b"], activation="softplus",
                          out_dtype=jnp.float32).reshape(B, L, di)

    y = selective_scan(delta, xc, z, Bm, Cm, p["A_T"], p["D"])

    out = pallas_matmul(y.astype(jnp.bfloat16).reshape(B * L, di),
                        p["out_proj_wT"], out_dtype=jnp.bfloat16)
    return out.reshape(B, L, D)


def mamba_block(x, p):
    identity = x
    B, H, W, C = x.shape
    t = x.reshape(B, H * W, C)            # NHWC -> (B, L, C), no transpose
    t = mamba(t, p["mamba"])
    t = layer_norm(t, p["ln_g"], p["ln_b"])
    t = t.reshape(B, H, W, C).astype(jnp.bfloat16)
    t = se_block(t, p["se"])
    return t + identity                   # proj is nn.Identity


def down_block(x, p):
    x = cbr(x, p["conv"])
    x = mamba_block(x, p["mb"])
    return x, max_pool2(x)


def up_block(x1, x2, p):
    x1 = conv_transpose_2x2(x1, p["up_w"], p["up_b"])
    x = jnp.concatenate([x2, x1], axis=-1)
    x = cbr(x, p["conv"])
    x = mamba_block(x, p["mb"])
    return x


# ----------------------------------------------------------------------------
# Parameter init (deterministic, synthetic) -- BN folded + weights pre-laid-out
# ----------------------------------------------------------------------------
class KeyGen:
    def __init__(self, key):
        self.key = key

    def __call__(self):
        self.key, sub = jax.random.split(self.key)
        return sub


def _normal(key, shape, scale):
    return jax.random.normal(key, shape, jnp.float32) * scale


def init_cbr(kg, cin, cout):
    w = _normal(kg(), (cout, cin, 3, 3), 1.0 / math.sqrt(cin * 9))
    b = _normal(kg(), (cout,), 0.01)
    scale = 1.0 / math.sqrt(1.0 + _BN_EPS)   # BN eval: gamma=1, beta=0, m=0, v=1
    w = w * scale
    b = b * scale
    w_kc = jnp.transpose(w, (2, 3, 1, 0)).reshape(9 * cin, cout)
    return {"w": w_kc.astype(jnp.bfloat16), "b": b.astype(jnp.float32)}


def init_se(kg, c, reduction=16):
    cr = c // reduction
    fc1 = _normal(kg(), (cr, c), 1.0 / math.sqrt(c))
    fc2 = _normal(kg(), (c, cr), 1.0 / math.sqrt(cr))
    return {"w1": fc1.T.astype(jnp.bfloat16), "w2": fc2.T.astype(jnp.bfloat16)}


def init_mamba(kg, d_model, d_state=16, d_conv=4, expand=2):
    di = expand * d_model
    dtr = math.ceil(d_model / 16)
    in_w = _normal(kg(), (2 * di, d_model), 1.0 / math.sqrt(d_model))
    x_w = _normal(kg(), (dtr + 2 * d_state, di), 1.0 / math.sqrt(di))
    dt_w = _normal(kg(), (di, dtr), 1.0 / math.sqrt(dtr))
    out_w = _normal(kg(), (d_model, di), 1.0 / math.sqrt(di))
    A_log = jnp.log(jnp.tile(jnp.arange(1, d_state + 1, dtype=jnp.float32),
                             (di, 1)))
    return {
        "d_inner": di, "d_state": d_state, "d_conv": d_conv, "dt_rank": dtr,
        "in_proj_wT": in_w.T.astype(jnp.bfloat16),
        "conv_w": _normal(kg(), (di, d_conv), 1.0 / math.sqrt(d_conv)),
        "conv_b": _normal(kg(), (di,), 0.01),
        "x_proj_wT": x_w.T.astype(jnp.bfloat16),
        "dt_proj_wT": dt_w.T.astype(jnp.bfloat16),
        "dt_proj_b": _normal(kg(), (di,), 0.1),
        "A_T": (-jnp.exp(A_log)).T,                    # (ds, di) f32
        "D": jnp.ones((1, di), jnp.float32),
        "out_proj_wT": out_w.T.astype(jnp.bfloat16),
    }


def init_mamba_block(kg, c):
    return {"mamba": init_mamba(kg, c),
            "ln_g": jnp.ones((c,), jnp.float32),
            "ln_b": jnp.zeros((c,), jnp.float32),
            "se": init_se(kg, c)}


def init_down(kg, cin, cout):
    return {"conv": init_cbr(kg, cin, cout), "mb": init_mamba_block(kg, cout)}


def init_up(kg, cin, cout):
    w = _normal(kg(), (cin, cout, 2, 2), 1.0 / math.sqrt(cin * 4))
    b = _normal(kg(), (cout,), 0.01)
    w_kc = jnp.transpose(w, (0, 2, 3, 1)).reshape(cin, 4 * cout)
    return {"up_w": w_kc.astype(jnp.bfloat16),
            "up_b": jnp.tile(b, 4).astype(jnp.float32),
            "conv": init_cbr(kg, cin, cout),
            "mb": init_mamba_block(kg, cout)}


def init_final(kg, cin, cout):
    w = _normal(kg(), (cout, cin, 1, 1), 1.0 / math.sqrt(cin))
    b = _normal(kg(), (cout,), 0.01)
    return {"w": w.reshape(cout, cin).T.astype(jnp.bfloat16),
            "b": b.astype(jnp.float32)}


def init_params(key, in_channels=3, out_channels=5):
    kg = KeyGen(key)
    P = {}
    P["enc1"] = init_down(kg, in_channels, 64)
    P["enc2"] = init_down(kg, 64, 128)
    P["enc3"] = init_down(kg, 128, 256)
    P["enc4"] = init_down(kg, 256, 512)
    P["x4_dem_1"] = init_cbr(kg, 512, 64)
    P["x3_dem_1"] = init_cbr(kg, 256, 64)
    P["x2_dem_1"] = init_cbr(kg, 128, 64)
    P["x1_dem_1"] = init_cbr(kg, 64, 64)
    for name in ["x4_x3", "x3_x2", "x2_x1", "x4_x3_x2", "x3_x2_x1",
                 "x4_x3_x2_x1"]:
        P[name] = init_cbr(kg, 64, 64)
    P["x4_3_dem"] = init_cbr(kg, 64, 256)
    P["x3_2_dem"] = init_cbr(kg, 64, 128)
    P["x4_3_2_dem"] = init_cbr(kg, 64, 128)
    P["x2_1_dem"] = init_cbr(kg, 64, 64)
    P["x3_2_1_dem"] = init_cbr(kg, 64, 64)
    P["x4_3_2_1_dem"] = init_cbr(kg, 64, 64)
    P["pre_bottleneck"] = init_cbr(kg, 512, 1024)
    P["dec4"] = init_up(kg, 1024, 512)
    P["dec3"] = init_up(kg, 512, 256)
    P["dec2"] = init_up(kg, 256, 128)
    P["dec1"] = init_up(kg, 128, 64)
    P["final"] = init_final(kg, 64, out_channels)
    return P


# ----------------------------------------------------------------------------
# Full MambaUNet forward (NCHW in / NCHW out; NHWC bf16 internally)
# ----------------------------------------------------------------------------
def mamba_unet_forward(x, P):
    x = jnp.transpose(x, (0, 2, 3, 1)).astype(jnp.bfloat16)   # -> NHWC bf16

    x1, p1 = down_block(x, P["enc1"])
    x2, p2 = down_block(p1, P["enc2"])
    x3, p3 = down_block(p2, P["enc3"])
    x4, p4 = down_block(p3, P["enc4"])

    x4_dem_1 = cbr(x4, P["x4_dem_1"])
    x3_dem_1 = cbr(x3, P["x3_dem_1"])
    x2_dem_1 = cbr(x2, P["x2_dem_1"])
    x1_dem_1 = cbr(x1, P["x1_dem_1"])

    def up(a, ref):
        return upsample_bilinear(a, ref.shape[1:3])

    x4_3 = cbr(jnp.abs(up(x4_dem_1, x3) - x3_dem_1), P["x4_x3"])
    x3_2 = cbr(jnp.abs(up(x3_dem_1, x2) - x2_dem_1), P["x3_x2"])
    x2_1 = cbr(jnp.abs(up(x2_dem_1, x1) - x1_dem_1), P["x2_x1"])
    x4_3_2 = cbr(jnp.abs(up(x4_3, x2) - x3_2), P["x4_x3_x2"])
    x3_2_1 = cbr(jnp.abs(up(x3_2, x1) - x2_1), P["x3_x2_x1"])
    x4_3_2_1 = cbr(jnp.abs(up(x4_3_2, x1) - x3_2_1), P["x4_x3_x2_x1"])

    x3 = x3 + cbr(x4_3, P["x4_3_dem"])
    x2 = x2 + cbr(x3_2, P["x3_2_dem"]) + cbr(x4_3_2, P["x4_3_2_dem"])
    x1 = (x1 + cbr(x2_1, P["x2_1_dem"]) + cbr(x3_2_1, P["x3_2_1_dem"])
          + cbr(x4_3_2_1, P["x4_3_2_1_dem"]))

    p4_processed = cbr(p4, P["pre_bottleneck"])
    # TODO(synk): CSCA_blocks is not defined in the reference source; treated
    # as identity (shape-preserving).
    b = p4_processed

    d4 = up_block(b, x4, P["dec4"])
    d3 = up_block(d4, x3, P["dec3"])
    d2 = up_block(d3, x2, P["dec2"])
    d1 = up_block(d2, x1, P["dec1"])
    out = conv1x1(d1, P["final"]["w"], P["final"]["b"], out_dtype=jnp.float32)
    return jnp.transpose(out, (0, 3, 1, 2))                   # -> NCHW f32


# ----------------------------------------------------------------------------
if __name__ == "__main__":
    key = jax.random.PRNGKey(0)
    kp, kx = jax.random.split(key)
    params = init_params(kp, in_channels=3, out_channels=5)

    x = jax.random.normal(kx, (2, 3, 16, 16), jnp.float32)    # NCHW input
    out = mamba_unet_forward(x, params)
    out = jax.block_until_ready(out)
    assert out.shape == (2, 5, 16, 16), out.shape
    assert bool(jnp.all(jnp.isfinite(out)))
    print("KERNEL_OK")
</pallas_src>

<mosaic_0001>
module attributes {stable_mosaic.version = 11 : i64} {
  func.func @kernel(%arg0: i32, %arg1: i32, %arg2: i32, %arg3: memref<256x32xbf16, #tpu.memory_space<vmem>>, %arg4: memref<32x64xbf16, #tpu.memory_space<vmem>>, %arg5: memref<1x64xf32, #tpu.memory_space<vmem>>, %arg6: memref<256x64xbf16, #tpu.memory_space<vmem>>, %arg7: memref<256x64xf32, #tpu.memory_space<vmem>>) attributes {dimension_semantics = [#tpu.dimension_semantics<parallel>, #tpu.dimension_semantics<parallel>, #tpu.dimension_semantics<arbitrary>], iteration_bounds = array<i64: 2, 1, 1>, scalar_prefetch = 0 : i64, scratch_operands = 1 : i64, tpu.core_type = #tpu.core_type<tc>, window_params = [{transform_indices = @transform_0, window_bounds = array<i64: 256, 32>}, {transform_indices = @transform_1, window_bounds = array<i64: 32, 64>}, {transform_indices = @transform_2, window_bounds = array<i64: 1, 64>}, {transform_indices = @transform_3, window_bounds = array<i64: 256, 64>}]} {
    %c0_i32 = arith.constant 0 : i32
    %0 = arith.cmpi eq, %arg2, %c0_i32 : i32
    %1 = arith.extui %0 : i1 to i32
    %c0_i32_0 = arith.constant 0 : i32
    %2 = arith.cmpi ne, %1, %c0_i32_0 : i32
    scf.if %2 {
      %cst_10 = arith.constant 0.000000e+00 : f32
      %12 = vector.broadcast %cst_10 : f32 to vector<256x64xf32>
      %c0_11 = arith.constant 0 : index
      %c0_12 = arith.constant 0 : index
      %13 = vector.load %arg7[%c0_11, %c0_12] : memref<256x64xf32, #tpu.memory_space<vmem>>, vector<256x64xf32>
      tpu.vector_store %arg7[%c0_11, %c0_12], %12 {strides = array<i32>} : memref<256x64xf32, #tpu.memory_space<vmem>>, vector<256x64xf32>,
    } else {
    }
    %c0 = arith.constant 0 : index
    %c0_1 = arith.constant 0 : index
    %3 = vector.load %arg7[%c0, %c0_1] : memref<256x64xf32, #tpu.memory_space<vmem>>, vector<256x64xf32>
    %c0_2 = arith.constant 0 : index
    %c0_3 = arith.constant 0 : index
    %4 = vector.load %arg3[%c0_2, %c0_3] : memref<256x32xbf16, #tpu.memory_space<vmem>>, vector<256x32xbf16>
    %c0_4 = arith.constant 0 : index
    %c0_5 = arith.constant 0 : index
    %5 = vector.load %arg4[%c0_4, %c0_5] : memref<32x64xbf16, #tpu.memory_space<vmem>>, vector<32x64xbf16>
    %cst = arith.constant dense<0.000000e+00> : vector<256x64xf32>
    %6 = tpu.matmul %4, %5, %cst {dimension_numbers = #tpu.dot_dimension_numbers<[1], [0], [0], [1], [0, 0, 1, 1], [], []>} : vector<256x32xbf16>, vector<32x64xbf16>, vector<256x64xf32> -> vector<256x64xf32>
    %7 = arith.addf %3, %6 : vector<256x64xf32>
    %c0_6 = arith.constant 0 : index
    %c0_7 = arith.constant 0 : index
    %8 = vector.load %arg7[%c0_6, %c0_7] : memref<256x64xf32, #tpu.memory_space<vmem>>, vector<256x64xf32>
    tpu.vector_store %arg7[%c0_6, %c0_7], %7 {strides = array<i32>} : memref<256x64xf32, #tpu.memory_space<vmem>>, vector<256x64xf32>,
    %c0_i32_8 = arith.constant 0 : i32
    %9 = arith.cmpi eq, %arg2, %c0_i32_8 : i32
    %10 = arith.extui %9 : i1 to i32
    %c0_i32_9 = arith.constant 0 : i32
    %11 = arith.cmpi ne, %10, %c0_i32_9 : i32
    scf.if %11 {
      %c0_10 = arith.constant 0 : index
      %c0_11 = arith.constant 0 : index
      %12 = vector.load %arg7[%c0_10, %c0_11] : memref<256x64xf32, #tpu.memory_space<vmem>>, vector<256x64xf32>
      %c0_12 = arith.constant 0 : index
      %c0_13 = arith.constant 0 : index
      %13 = vector.load %arg5[%c0_12, %c0_13] : memref<1x64xf32, #tpu.memory_space<vmem>>, vector<1x64xf32>
      %14 = vector.broadcast %13 : vector<1x64xf32> to vector<256x64xf32>
      %15 = arith.addf %12, %14 : vector<256x64xf32>
      %cst_14 = arith.constant 0.000000e+00 : f32
      %16 = vector.broadcast %cst_14 : f32 to vector<256x64xf32>
      %17 = arith.maximumf %15, %16 : vector<256x64xf32>
      %18 = arith.truncf %17 : vector<256x64xf32> to vector<256x64xbf16>
      %c0_15 = arith.constant 0 : index
      %c0_16 = arith.constant 0 : index
      %19 = vector.load %arg6[%c0_15, %c0_16] : memref<256x64xbf16, #tpu.memory_space<vmem>>, vector<256x64xbf16>
      tpu.vector_store %arg6[%c0_15, %c0_16], %18 {strides = array<i32>} : memref<256x64xbf16, #tpu.memory_space<vmem>>, vector<256x64xbf16>,
    } else {
    }
    return
  }
  func.func @transform_0(%arg0: i32, %arg1: i32, %arg2: i32) -> (i32, i32) {
    %c0_i32 = arith.constant 0 : i32
    return %arg0, %arg2 : i32, i32
  }
  func.func @transform_1(%arg0: i32, %arg1: i32, %arg2: i32) -> (i32, i32) {
    %c0_i32 = arith.constant 0 : i32
    return %arg2, %arg1 : i32, i32
  }
  func.func @transform_2(%arg0: i32, %arg1: i32, %arg2: i32) -> (i32, i32) {
    %c0_i32 = arith.constant 0 : i32
    %c0_i32_0 = arith.constant 0 : i32
    return %c0_i32, %arg1 : i32, i32
  }
  func.func @transform_3(%arg0: i32, %arg1: i32, %arg2: i32) -> (i32, i32) {
    %c0_i32 = arith.constant 0 : i32
    return %arg0, %arg1 : i32, i32
  }
}

</mosaic_0001>

<llo_original>
// kernel: tpu_custom_call.1
$region0: #{tpu_custom_call.1}
  #allocation0 [shape = 'u32[]', space=smem, size = 0x4, offset = 0x4, fixed_abs, tag = 'smem constant byte address 0x4 - core index']
  #allocation1 [shape = 'u32[144,128]{1,0:T(1,128)}', space=vmem, size = 0x12000, scoped, tag = 'internal scratch']
  #allocation2 [shape = 'f32[256,64]{1,0:T(8,128)}', space=vmem, size = 0x20000, scoped, tag = 'scratch operand']
  %s0 = inlined_call_operand.vmem [shape: bf16[512,32], index: 0, kind: input, shape index: {}]
  %s1 = inlined_call_operand.vmem [shape: bf16[32,64], index: 1, kind: input, shape index: {}]
  %s2 = inlined_call_operand.vmem [shape: f32[1,64], index: 2, kind: input, shape index: {}]
  %s3 = inlined_call_operand.vmem [shape: bf16[512,64], index: 3, kind: output, shape index: {}]
  %s4 = sld [smem:[#allocation0]]
  $region53: #{tpu_custom_call.1} parent=0
    _
  %s6 = ssub.s32 1, %s4
  %s7 = scalar_select 0, %s6, %s4
  loop: start=0, step=1, limit=4
  $region2: #{tpu_custom_call.1} parent=0 // loop_pre_header
    _
  $region3: #{tpu_custom_call.1} parent=0 // loop_header
    %s9 = sphi 0, %s13
    %p10 = scmp.ge.s32.totalorder %s9, 4
    %s16 = sphi 0, %s35
    %s17 = sphi 0, %s31
    %s18 = sphi 0, %s27
    %s19 = sphi 0, %s16
    %s20 = sphi 0, %s17
    %s21 = sphi 0, %s18
    %s22 = sphi 0, %s19
    %s23 = sphi 0, %s20
    %s24 = sphi 0, %s21
    %s40 = sphi 0, %s42
    %s43 = sphi 0, %s40
    %s44 = sphi 0, %s43
    %s60 = sphi 0, %s44
    %s68 = sphi 0, %s70
    %s71 = sphi 0, %s68
    %s72 = sphi 0, %s71
    %s88 = sphi 0, %s72
    %s94 = sphi 0, %s96
    %s97 = sphi 0, %s94
    %s98 = sphi 0, %s97
    %s114 = sphi 0, %s98
    %s122 = sphi 0, %s124
    %s125 = sphi 0, %s122
    %s126 = sphi 0, %s125
    %s142 = sphi 0, %s126
  $region4: #{tpu_custom_call.1} parent=0 // loop_header_branch
    %12 = sbr.rel (%p10) target = $region8
  $region5: #{tpu_custom_call.1} parent=0 // loop_body
    %s14 = ssub.s32 %s9, 1
    %s15 = ssub.s32 %s9, 2
    %s25 = sadd.s32 1, %s18
    %p26 = scmp.ge.s32.totalorder %s25, 1
    %s27 = scalar_select %p26, 0, %s25
    %s28 = sadd.s32 1, %s17
    %s29 = scalar_select %p26, %s28, %s17
    %p30 = scmp.ge.s32.totalorder %s29, 1
    %s31 = scalar_select %p30, 0, %s29
    %s32 = sadd.s32 1, %s16
    %s33 = scalar_select %p30, %s32, %s16
    %p34 = scmp.ge.s32.totalorder %s33, 2
    %s35 = scalar_select %p34, 0, %s33
    %s36 = ssub.s32 %s16, %s35
    %s37 = ssub.s32 %s18, %s27
    %s38 = sor.u32 %s36, %s37
    %p39 = scmp.eq.s32.totalorder %s38, 0
    %s41 = sadd.s32 %s40, 1
    %s42 = scalar_select %p39, %s40, %s41
    %p45 = pneg %p39
    %p46 = scmp.eq.s32.totalorder %s9, 1
    %p47 = por %p45, %p46
    %p48 = scmp.ne.s32.totalorder %s40, %s43
    %p49 = scmp.eq.s32.totalorder %s9, 0
    %p50 = por %p48, %p49
    %p51 = scmp.ne.s32.totalorder %s40, %s43
    %p52 = scmp.eq.s32.totalorder %s14, 1
    %p53 = por %p51, %p52
    %p54 = scmp.ne.s32.totalorder %s43, %s44
    %p55 = scmp.eq.s32.totalorder %s14, 0
    %p56 = por %p54, %p55
    %p57 = scmp.ne.s32.totalorder %s43, %s44
    %p58 = scmp.eq.s32.totalorder %s15, 1
    %p59 = por %p57, %p58
    %p61 = scmp.ne.s32.totalorder %s44, %s60
    %p62 = scmp.eq.s32.totalorder %s15, 0
    %p63 = por %p61, %p62
    %s64 = ssub.s32 %s18, %s27
    %s65 = ssub.s32 %s17, %s31
    %s66 = sor.u32 %s64, %s65
    %p67 = scmp.eq.s32.totalorder %s66, 0
    %s69 = sadd.s32 %s68, 1
    %s70 = scalar_select %p67, %s68, %s69
    %p73 = pneg %p67
    %p74 = scmp.eq.s32.totalorder %s9, 1
    %p75 = por %p73, %p74
    %p76 = scmp.ne.s32.totalorder %s68, %s71
    %p77 = scmp.eq.s32.totalorder %s9, 0
    %p78 = por %p76, %p77
    %p79 = scmp.ne.s32.totalorder %s68, %s71
    %p80 = scmp.eq.s32.totalorder %s14, 1
    %p81 = por %p79, %p80
    %p82 = scmp.ne.s32.totalorder %s71, %s72
    %p83 = scmp.eq.s32.totalorder %s14, 0
    %p84 = por %p82, %p83
    %p85 = scmp.ne.s32.totalorder %s71, %s72
    %p86 = scmp.eq.s32.totalorder %s15, 1
    %p87 = por %p85, %p86
    %p89 = scmp.ne.s32.totalorder %s72, %s88
    %p90 = scmp.eq.s32.totalorder %s15, 0
    %p91 = por %p89, %p90
    %s92 = ssub.s32 %s17, %s31
    %p93 = scmp.eq.s32.totalorder %s92, 0
    %s95 = sadd.s32 %s94, 1
    %s96 = scalar_select %p93, %s94, %s95
    %p99 = pneg %p93
    %p100 = scmp.eq.s32.totalorder %s9, 1
    %p101 = por %p99, %p100
    %p102 = scmp.ne.s32.totalorder %s94, %s97
    %p103 = scmp.eq.s32.totalorder %s9, 0
    %p104 = por %p102, %p103
    %p105 = scmp.ne.s32.totalorder %s94, %s97
    %p106 = scmp.eq.s32.totalorder %s14, 1
    %p107 = por %p105, %p106
    %p108 = scmp.ne.s32.totalorder %s97, %s98
    %p109 = scmp.eq.s32.totalorder %s14, 0
    %p110 = por %p108, %p109
    %p111 = scmp.ne.s32.totalorder %s97, %s98
    %p112 = scmp.eq.s32.totalorder %s15, 1
    %p113 = por %p111, %p112
    %p115 = scmp.ne.s32.totalorder %s98, %s114
    %p116 = scmp.eq.s32.totalorder %s15, 0
    %p117 = por %p115, %p116
    %s118 = ssub.s32 %s16, %s35
    %s119 = ssub.s32 %s17, %s31
    %s120 = sor.u32 %s118, %s119
    %p121 = scmp.eq.s32.totalorder %s120, 0
    %s123 = sadd.s32 %s122, 1
    %s124 = scalar_select %p121, %s122, %s123
    %p127 = pneg %p121
    %p128 = scmp.eq.s32.totalorder %s9, 1
    %p129 = por %p127, %p128
    %p130 = scmp.ne.s32.totalorder %s122, %s125
    %p131 = scmp.eq.s32.totalorder %s9, 0
    %p132 = por %p130, %p131
    %p133 = scmp.ne.s32.totalorder %s122, %s125
    %p134 = scmp.eq.s32.totalorder %s14, 1
    %p135 = por %p133, %p134
    %p136 = scmp.ne.s32.totalorder %s125, %s126
    %p137 = scmp.eq.s32.totalorder %s14, 0
    %p138 = por %p136, %p137
    %p139 = scmp.ne.s32.totalorder %s125, %s126
    %p140 = scmp.eq.s32.totalorder %s15, 1
    %p141 = por %p139, %p140
    %p143 = scmp.ne.s32.totalorder %s126, %s142
    %p144 = scmp.eq.s32.totalorder %s15, 0
    %p145 = por %p143, %p144
    %p146 = scmp.le.s32.totalorder 1, %s9
    %p147 = scmp.lt.s32.totalorder %s9, 3
    %p148 = pnand %p146, %p147
    %p149 = pneg %p148
    // Predicated region
    $region9: #{tpu_custom_call.1} parent=5 // pred_check
      _
    $region10: #{tpu_custom_call.1} parent=5 // pred_check_branch
      %151 = sbr.rel (%p148) target = $region12
    $region11: #{tpu_custom_call.1} parent=5 // pred_region
      %s152 = ssub.s32 %s9, 1
      // Predicated region
      $region13: #{tpu_custom_call.1} parent=11 // pred_check
        %p153 = pneg %p84
      $region14: #{tpu_custom_call.1} parent=11 // pred_check_branch
        %155 = sbr.rel (%p153) target = $region16
      $region15: #{tpu_custom_call.1} parent=11 // pred_region
        %s156 = smul.u32 4, %s21
        %p157 = scmp.lt.s32.totalorder %s156, 3
        %s158 = scalar_select %p157, %s156, 3
        %p159 = scmp.lt.s32.totalorder %s20, 0
        %s160 = scalar_select %p159, %s20, 0
        %s161 = sadd.s32 %s160, %s158
        %s162 = smul.addr %s161, 4
        %s163 = scalar_lea.vmem %s1, %s162
        %s164 = smul.u32 4, %s21
      $region16: #{tpu_custom_call.1} parent=11 // pred_fallthru
        _
      // Predicated region
      $region17: #{tpu_custom_call.1} parent=11 // pred_check
        %p165 = pneg %p110
      $region18: #{tpu_custom_call.1} parent=11 // pred_check_branch
        %167 = sbr.rel (%p165) target = $region20
      $region19: #{tpu_custom_call.1} parent=11 // pred_region
        %p168 = scmp.lt.s32.totalorder %s20, 0
        %s169 = scalar_select %p168, %s20, 0
        %s170 = scalar_lea.vmem %s2, %s169
      $region20: #{tpu_custom_call.1} parent=11 // pred_fallthru
        _
    $region12: #{tpu_custom_call.1} parent=5 // pred_fallthru
      _
    %p171 = scmp.lt.s32.totalorder %s9, 2
    // Predicated region
    $region21: #{tpu_custom_call.1} parent=5 // pred_check
      %p172 = pneg %p171
    $region22: #{tpu_custom_call.1} parent=5 // pred_check_branch
      %174 = sbr.rel (%p172) target = $region24
    $region23: #{tpu_custom_call.1} parent=5 // pred_region
      // Predicated region
      $region25: #{tpu_custom_call.1} parent=23 // pred_check
        %p175 = pneg %p50
      $region26: #{tpu_custom_call.1} parent=23 // pred_check_branch
        %177 = sbr.rel (%p175) target = $region28
      $region27: #{tpu_custom_call.1} parent=23 // pred_region
        %s178 = smul.u32 32, %s16
        %p179 = scmp.lt.s32.totalorder %s178, 63
        %s180 = scalar_select %p179, %s178, 63
        %p181 = scmp.lt.s32.totalorder %s18, 0
        %s182 = scalar_select %p181, %s18, 0
        %s183 = sadd.s32 %s182, %s180
        %s184 = smul.addr %s183, 4
        %s185 = scalar_lea.vmem %s0, %s184
        %s186 = smul.u32 32, %s16
      $region28: #{tpu_custom_call.1} parent=23 // pred_fallthru
        _
    $region24: #{tpu_custom_call.1} parent=5 // pred_fallthru
      _
    %p187 = scmp.le.s32.totalorder 1, %s9
    %p188 = scmp.lt.s32.totalorder %s9, 3
    %p189 = pnand %p187, %p188
    %p190 = pneg %p189
    // Predicated region
    $region29: #{tpu_custom_call.1} parent=5 // pred_check
      _
    $region30: #{tpu_custom_call.1} parent=5 // pred_check_branch
      %192 = sbr.rel (%p189) target = $region32
    $region31: #{tpu_custom_call.1} parent=5 // pred_region
      %s193 = ssub.s32 %s9, 1
      %s194 = smul.u32 32, %s19
      %p195 = scmp.lt.s32.totalorder %s194, 63
      %s196 = scalar_select %p195, %s194, 63
      %p197 = scmp.lt.s32.totalorder %s21, 0
      %s198 = scalar_select %p197, %s21, 0
      %s199 = sadd.s32 %s198, %s196
      %s200 = smul.addr %s199, 4
      %s201 = scalar_lea.vmem %s0, %s200
      %p202 = pneg %p56
      %p203 = pneg %p53
      %s204 = smul.u32 4, %s21
      %p205 = scmp.lt.s32.totalorder %s204, 3
      %s206 = scalar_select %p205, %s204, 3
      %p207 = scmp.lt.s32.totalorder %s20, 0
      %s208 = scalar_select %p207, %s20, 0
      %s209 = sadd.s32 %s208, %s206
      %s210 = smul.addr %s209, 4
      %s211 = scalar_lea.vmem %s1, %s210
      %p212 = pneg %p84
      %p213 = pneg %p81
      %p214 = scmp.lt.s32.totalorder %s20, 0
      %s215 = scalar_select %p214, %s20, 0
      %s216 = scalar_lea.vmem %s2, %s215
      %p217 = pneg %p110
      %p218 = pneg %p107
      %p219 = pneg %p138
      %p220 = pneg %p135
      %s221 = smul.u32 32, %s19
      %p222 = scmp.lt.s32.totalorder %s221, 63
      %s223 = scalar_select %p222, %s221, 63
      %p224 = scmp.lt.s32.totalorder %s20, 0
      %s225 = scalar_select %p224, %s20, 0
      %s226 = sadd.s32 %s225, %s223
      %s227 = smul.addr %s226, 4
      %s228 = scalar_lea.vmem %s3, %s227
      %s229 = smul.u32 32, %s19
      %p230 = scmp.lt.s32.totalorder %s229, 63
      %s231 = scalar_select %p230, %s229, 63
      %p232 = scmp.lt.s32.totalorder %s21, 0
      %s233 = scalar_select %p232, %s21, 0
      %s234 = sadd.s32 %s233, %s231
      %s235 = smul.addr %s234, 4
      %s236 = scalar_lea.vmem %s0, %s235
      %s237 = smul.u32 32, %s19
      %s238 = smul.u32 4, %s21
      %p239 = scmp.lt.s32.totalorder %s238, 3
      %s240 = scalar_select %p239, %s238, 3
      %p241 = scmp.lt.s32.totalorder %s20, 0
      %s242 = scalar_select %p241, %s20, 0
      %s243 = sadd.s32 %s242, %s240
      %s244 = smul.addr %s243, 4
      %s245 = scalar_lea.vmem %s1, %s244
      %s246 = smul.u32 4, %s21
      %p247 = scmp.lt.s32.totalorder %s20, 0
      %s248 = scalar_select %p247, %s20, 0
      %s249 = scalar_lea.vmem %s2, %s248
      %s250 = smul.u32 32, %s19
      %p251 = scmp.lt.s32.totalorder %s250, 63
      %s252 = scalar_select %p251, %s250, 63
      %p253 = scmp.lt.s32.totalorder %s20, 0
      %s254 = scalar_select %p253, %s20, 0
      %s255 = sadd.s32 %s254, %s252
      %s256 = smul.addr %s255, 4
      %s257 = scalar_lea.vmem %s3, %s256
      %s258 = smul.u32 32, %s19
      %p260 = scmp.eq.s32.totalorder %s21, 0
      // Predicated region
      $region33: #{tpu_custom_call.1} parent=31 // pred_check
        %p261 = pneg %p260
      $region34: #{tpu_custom_call.1} parent=31 // pred_check_branch
        %263 = sbr.rel (%p261) target = $region36
      $region35: #{tpu_custom_call.1} parent=31 // pred_region
        %vm264 = vcmask 523264
        %265 = vst.msk [vmem:[#allocation2] sm:$0xff] %vm264, 0.0
        %266 = vst.msk [vmem:[#allocation2 + $0x8] sm:$0xff] %vm264, 0.0
        %267 = vst.msk [vmem:[#allocation2 + $0x10] sm:$0xff] %vm264, 0.0
        %268 = vst.msk [vmem:[#allocation2 + $0x18] sm:$0xff] %vm264, 0.0
        %269 = vst.msk [vmem:[#allocation2 + $0x20] sm:$0xff] %vm264, 0.0
        %270 = vst.msk [vmem:[#allocation2 + $0x28] sm:$0xff] %vm264, 0.0
        %271 = vst.msk [vmem:[#allocation2 + $0x30] sm:$0xff] %vm264, 0.0
        %272 = vst.msk [vmem:[#allocation2 + $0x38] sm:$0xff] %vm264, 0.0
        %273 = vst.msk [vmem:[#allocation2 + $0x40] sm:$0xff] %vm264, 0.0
        %274 = vst.msk [vmem:[#allocation2 + $0x48] sm:$0xff] %vm264, 0.0
        %275 = vst.msk [vmem:[#allocation2 + $0x50] sm:$0xff] %vm264, 0.0
        %276 = vst.msk [vmem:[#allocation2 + $0x58] sm:$0xff] %vm264, 0.0
        %277 = vst.msk [vmem:[#allocation2 + $0x60] sm:$0xff] %vm264, 0.0
        %278 = vst.msk [vmem:[#allocation2 + $0x68] sm:$0xff] %vm264, 0.0
        %279 = vst.msk [vmem:[#allocation2 + $0x70] sm:$0xff] %vm264, 0.0
        %280 = vst.msk [vmem:[#allocation2 + $0x78] sm:$0xff] %vm264, 0.0
        %281 = vst.msk [vmem:[#allocation2 + $0x80] sm:$0xff] %vm264, 0.0
        %282 = vst.msk [vmem:[#allocation2 + $0x88] sm:$0xff] %vm264, 0.0
        %283 = vst.msk [vmem:[#allocation2 + $0x90] sm:$0xff] %vm264, 0.0
        %284 = vst.msk [vmem:[#allocation2 + $0x98] sm:$0xff] %vm264, 0.0
        %285 = vst.msk [vmem:[#allocation2 + $0xa0] sm:$0xff] %vm264, 0.0
        %286 = vst.msk [vmem:[#allocation2 + $0xa8] sm:$0xff] %vm264, 0.0
        %287 = vst.msk [vmem:[#allocation2 + $0xb0] sm:$0xff] %vm264, 0.0
        %288 = vst.msk [vmem:[#allocation2 + $0xb8] sm:$0xff] %vm264, 0.0
        %289 = vst.msk [vmem:[#allocation2 + $0xc0] sm:$0xff] %vm264, 0.0
        %290 = vst.msk [vmem:[#allocation2 + $0xc8] sm:$0xff] %vm264, 0.0
        %291 = vst.msk [vmem:[#allocation2 + $0xd0] sm:$0xff] %vm264, 0.0
        %292 = vst.msk [vmem:[#allocation2 + $0xd8] sm:$0xff] %vm264, 0.0
        %293 = vst.msk [vmem:[#allocation2 + $0xe0] sm:$0xff] %vm264, 0.0
        %294 = vst.msk [vmem:[#allocation2 + $0xe8] sm:$0xff] %vm264, 0.0
        %295 = vst.msk [vmem:[#allocation2 + $0xf0] sm:$0xff] %vm264, 0.0
        %296 = vst.msk [vmem:[#allocation2 + $0xf8] sm:$0xff] %vm264, 0.0
      $region36: #{tpu_custom_call.1} parent=31 // pred_fallthru
        _
      %v297 = vld [vmem:[#allocation2] sm:$0xff]
      %v298 = vld [vmem:[#allocation2 + $0x8] sm:$0xff]
      %v299 = vld [vmem:[#allocation2 + $0x10] sm:$0xff]
      %v300 = vld [vmem:[#allocation2 + $0x18] sm:$0xff]
      %v301 = vld [vmem:[#allocation2 + $0x20] sm:$0xff]
      %v302 = vld [vmem:[#allocation2 + $0x28] sm:$0xff]
      %v303 = vld [vmem:[#allocation2 + $0x30] sm:$0xff]
      %v304 = vld [vmem:[#allocation2 + $0x38] sm:$0xff]
      %v305 = vld [vmem:[#allocation2 + $0x40] sm:$0xff]
      %v306 = vld [vmem:[#allocation2 + $0x48] sm:$0xff]
      %v307 = vld [vmem:[#allocation2 + $0x50] sm:$0xff]
      %v308 = vld [vmem:[#allocation2 + $0x58] sm:$0xff]
      %v309 = vld [vmem:[#allocation2 + $0x60] sm:$0xff]
      %v310 = vld [vmem:[#allocation2 + $0x68] sm:$0xff]
      %v311 = vld [vmem:[#allocation2 + $0x70] sm:$0xff]
      %v312 = vld [vmem:[#allocation2 + $0x78] sm:$0xff]
      %v313 = vld [vmem:[#allocation2 + $0x80] sm:$0xff]
      %v314 = vld [vmem:[#allocation2 + $0x88] sm:$0xff]
      %v315 = vld [vmem:[#allocation2 + $0x90] sm:$0xff]
      %v316 = vld [vmem:[#allocation2 + $0x98] sm:$0xff]
      %v317 = vld [vmem:[#allocation2 + $0xa0] sm:$0xff]
      %v318 = vld [vmem:[#allocation2 + $0xa8] sm:$0xff]
      %v319 = vld [vmem:[#allocation2 + $0xb0] sm:$0xff]
      %v320 = vld [vmem:[#allocation2 + $0xb8] sm:$0xff]
      %v321 = vld [vmem:[#allocation2 + $0xc0] sm:$0xff]
      %v322 = vld [vmem:[#allocation2 + $0xc8] sm:$0xff]
      %v323 = vld [vmem:[#allocation2 + $0xd0] sm:$0xff]
      %v324 = vld [vmem:[#allocation2 + $0xd8] sm:$0xff]
      %v325 = vld [vmem:[#allocation2 + $0xe0] sm:$0xff]
      %v326 = vld [vmem:[#allocation2 + $0xe8] sm:$0xff]
      %v327 = vld [vmem:[#allocation2 + $0xf0] sm:$0xff]
      %v328 = vld [vmem:[#allocation2 + $0xf8] sm:$0xff]
      %v329 = vld [vmem:[%s236] sm:$0xf]
      %v330 = vld [vmem:[%s236 + $0x4] sm:$0xf]
      %v331 = vld [vmem:[%s236 + $0x8] sm:$0xf]
      %v332 = vld [vmem:[%s236 + $0xc] sm:$0xf]
      %v333 = vld [vmem:[%s236 + $0x10] sm:$0xf]
      %v334 = vld [vmem:[%s236 + $0x14] sm:$0xf]
      %v335 = vld [vmem:[%s236 + $0x18] sm:$0xf]
      %v336 = vld [vmem:[%s236 + $0x1c] sm:$0xf]
      %v337 = vld [vmem:[%s236 + $0x20] sm:$0xf]
      %v338 = vld [vmem:[%s236 + $0x24] sm:$0xf]
      %v339 = vld [vmem:[%s236 + $0x28] sm:$0xf]
      %v340 = vld [vmem:[%s236 + $0x2c] sm:$0xf]
      %v341 = vld [vmem:[%s236 + $0x30] sm:$0xf]
      %v342 = vld [vmem:[%s236 + $0x34] sm:$0xf]
      %v343 = vld [vmem:[%s236 + $0x38] sm:$0xf]
      %v344 = vld [vmem:[%s236 + $0x3c] sm:$0xf]
      %v345 = vld [vmem:[%s236 + $0x40] sm:$0xf]
      %v346 = vld [vmem:[%s236 + $0x44] sm:$0xf]
      %v347 = vld [vmem:[%s236 + $0x48] sm:$0xf]
      %v348 = vld [vmem:[%s236 + $0x4c] sm:$0xf]
      %v349 = vld [vmem:[%s236 + $0x50] sm:$0xf]
      %v350 = vld [vmem:[%s236 + $0x54] sm:$0xf]
      %v351 = vld [vmem:[%s236 + $0x58] sm:$0xf]
      %v352 = vld [vmem:[%s236 + $0x5c] sm:$0xf]
      %v353 = vld [vmem:[%s236 + $0x60] sm:$0xf]
      %v354 = vld [vmem:[%s236 + $0x64] sm:$0xf]
      %v355 = vld [vmem:[%s236 + $0x68] sm:$0xf]
      %v356 = vld [vmem:[%s236 + $0x6c] sm:$0xf]
      %v357 = vld [vmem:[%s236 + $0x70] sm:$0xf]
      %v358 = vld [vmem:[%s236 + $0x74] sm:$0xf]
      %v359 = vld [vmem:[%s236 + $0x78] sm:$0xf]
      %v360 = vld [vmem:[%s236 + $0x7c] sm:$0xf]
      %v361 = vld [vmem:[%s245] sm:$0xf]
      %v362 = vld [vmem:[%s245 + $0x4] sm:$0xf]
      %v363 = vld [vmem:[%s245 + $0x8] sm:$0xf]
      %v364 = vld [vmem:[%s245 + $0xc] sm:$0xf]
      %v397 = vunpack.c.l.b16 %v329
      %v398 = vunpack.c.l.b16 %v330
      %v399 = vunpack.c.l.b16 %v331
      %v400 = vunpack.c.l.b16 %v332
      %v401 = vunpack.c.l.b16 %v333
      %v402 = vunpack.c.l.b16 %v334
      %v403 = vunpack.c.l.b16 %v335
      %v404 = vunpack.c.l.b16 %v336
      %v405 = vunpack.c.l.b16 %v337
      %v406 = vunpack.c.l.b16 %v338
      %v407 = vunpack.c.l.b16 %v339
      %v408 = vunpack.c.l.b16 %v340
      %v409 = vunpack.c.l.b16 %v341
      %v410 = vunpack.c.l.b16 %v342
      %v411 = vunpack.c.l.b16 %v343
      %v412 = vunpack.c.l.b16 %v344
      %v413 = vunpack.c.l.b16 %v345
      %v414 = vunpack.c.l.b16 %v346
      %v415 = vunpack.c.l.b16 %v347
      %v416 = vunpack.c.l.b16 %v348
      %v417 = vunpack.c.l.b16 %v349
      %v418 = vunpack.c.l.b16 %v350
      %v419 = vunpack.c.l.b16 %v351
      %v420 = vunpack.c.l.b16 %v352
      %v421 = vunpack.c.l.b16 %v353
      %v422 = vunpack.c.l.b16 %v354
      %v423 = vunpack.c.l.b16 %v355
      %v424 = vunpack.c.l.b16 %v356
      %v425 = vunpack.c.l.b16 %v357
      %v426 = vunpack.c.l.b16 %v358
      %v427 = vunpack.c.l.b16 %v359
      %v428 = vunpack.c.l.b16 %v360
      %v429 = vpack.c.b16 %v398, %v397
      %v430 = vpack.c.b16 %v400, %v399
      %v431 = vpack.c.b16 %v402, %v401
      %v432 = vpack.c.b16 %v404, %v403
      %v433 = vpack.c.b16 %v406, %v405
      %v434 = vpack.c.b16 %v408, %v407
      %v435 = vpack.c.b16 %v410, %v409
      %v436 = vpack.c.b16 %v412, %v411
      %v437 = vpack.c.b16 %v414, %v413
      %v438 = vpack.c.b16 %v416, %v415
      %v439 = vpack.c.b16 %v418, %v417
      %v440 = vpack.c.b16 %v420, %v419
      %v441 = vpack.c.b16 %v422, %v421
      %v442 = vpack.c.b16 %v424, %v423
      %v443 = vpack.c.b16 %v426, %v425
      %v444 = vpack.c.b16 %v428, %v427
      %v449 = vunpack.c.l.b16 %v361
      %v450 = vunpack.c.l.b16 %v362
      %v451 = vunpack.c.l.b16 %v363
      %v452 = vunpack.c.l.b16 %v364
      %v453 = vpack.c.b16 %v450, %v449
      %v454 = vpack.c.b16 %v452, %v451
      %vm457 = vcmask 261120
      %v459 = vsel %vm457, %v429, 0
      %v462 = vsel %vm457, %v430, 0
      %v465 = vsel %vm457, %v431, 0
      %v468 = vsel %vm457, %v432, 0
      %v471 = vsel %vm457, %v433, 0
      %v474 = vsel %vm457, %v434, 0
      %v477 = vsel %vm457, %v435, 0
      %v480 = vsel %vm457, %v436, 0
      %v483 = vsel %vm457, %v437, 0
      %v486 = vsel %vm457, %v438, 0
      %v489 = vsel %vm457, %v439, 0
      %v492 = vsel %vm457, %v440, 0
      %v495 = vsel %vm457, %v441, 0
      %v498 = vsel %vm457, %v442, 0
      %v501 = vsel %vm457, %v443, 0
      %v504 = vsel %vm457, %v444, 0
      %506 = vmatprep.subr.bf16.mxu0 0
      %507 = vmatpush1.bf16.msra.mxu0 %v453
      %508 = vmatprep.subr.bf16.mxu0 0
      %509 = vmatpush1.bf16.msra.mxu0 %v454
      %510 = vmatprep.subr.bf16.mxu0 0
      %511 = vmatpush1.bf16.msra.mxu0 0
      %512 = vmatprep.subr.bf16.mxu0 0
      %513 = vmatpush1.bf16.msra.mxu0 0
      %514 = vmatprep.subr.bf16.mxu0 0
      %515 = vmatpush1.bf16.msra.mxu0 0
      %516 = vmatprep.subr.bf16.mxu0 0
      %517 = vmatpush1.bf16.msra.mxu0 0
      %518 = vmatprep.subr.bf16.mxu0 0
      %519 = vmatpush1.bf16.msra.mxu0 0
      %520 = vmatprep.subr.bf16.mxu0 0
      %521 = vmatpush1.bf16.msra.mxu0 0
      %522 = vmatprep.subr.bf16.mxu0 0
      %523 = vmatpush1.bf16.msra.mxu0 0
      %524 = vmatprep.subr.bf16.mxu0 0
      %525 = vmatpush1.bf16.msra.mxu0 0
      %526 = vmatprep.subr.bf16.mxu0 0
      %527 = vmatpush1.bf16.msra.mxu0 0
      %528 = vmatprep.subr.bf16.mxu0 0
      %529 = vmatpush1.bf16.msra.mxu0 0
      %530 = vmatprep.subr.bf16.mxu0 0
      %531 = vmatpush1.bf16.msra.mxu0 0
      %532 = vmatprep.subr.bf16.mxu0 0
      %533 = vmatpush1.bf16.msra.mxu0 0
      %534 = vmatprep.subr.bf16.mxu0 0
      %535 = vmatpush1.bf16.msra.mxu0 0
      %536 = vmatprep.subr.bf16.mxu0 0
      %537 = vmatpush1.bf16.msra.mxu0 0
      %538 = vmatprep.mubr.bf16.mxu0 0
      %539 = vmatmul.mubr.bf16.gmra.mrb[0].mxu0 %v459
      %v540 = vpop.f32.mrb[0].mxu0
      %v541 = vadd.f32 0.0, %v540
      %v542 = vpop.f32.mrb[0].mxu0
      %v543 = vpop.f32.mrb[0].mxu0
      %v544 = vadd.f32 0.0, %v543
      %v545 = vpop.f32.mrb[0].mxu0
      %546 = vmatprep.mubr.bf16.mxu0 0
      %547 = vmatmul.mubr.bf16.gmra.mrb[0].mxu0 %v462
      %v548 = vpop.f32.mrb[0].mxu0
      %v549 = vadd.f32 0.0, %v548
      %v550 = vpop.f32.mrb[0].mxu0
      %v551 = vpop.f32.mrb[0].mxu0
      %v552 = vadd.f32 0.0, %v551
      %v553 = vpop.f32.mrb[0].mxu0
      %554 = vmatprep.mubr.bf16.mxu0 0
      %555 = vmatmul.mubr.bf16.gmra.mrb[0].mxu0 %v465
      %v556 = vpop.f32.mrb[0].mxu0
      %v557 = vadd.f32 0.0, %v556
      %v558 = vpop.f32.mrb[0].mxu0
      %v559 = vpop.f32.mrb[0].mxu0
      %v560 = vadd.f32 0.0, %v559
      %v561 = vpop.f32.mrb[0].mxu0
      %562 = vmatprep.mubr.bf16.mxu0 0
      %563 = vmatmul.mubr.bf16.gmra.mrb[0].mxu0 %v468
      %v564 = vpop.f32.mrb[0].mxu0
      %v565 = vadd.f32 0.0, %v564
      %v566 = vpop.f32.mrb[0].mxu0
      %v567 = vpop.f32.mrb[0].mxu0
      %v568 = vadd.f32 0.0, %v567
      %v569 = vpop.f32.mrb[0].mxu0
      %570 = vmatprep.mubr.bf16.mxu0 0
      %571 = vmatmul.mubr.bf16.gmra.mrb[0].mxu0 %v471
      %v572 = vpop.f32.mrb[0].mxu0
      %v573 = vadd.f32 0.0, %v572
      %v574 = vpop.f32.mrb[0].mxu0
      %v575 = vpop.f32.mrb[0].mxu0
      %v576 = vadd.f32 0.0, %v575
      %v577 = vpop.f32.mrb[0].mxu0
      %578 = vmatprep.mubr.bf16.mxu0 0
      %579 = vmatmul.mubr.bf16.gmra.mrb[0].mxu0 %v474
      %v580 = vpop.f32.mrb[0].mxu0
      %v581 = vadd.f32 0.0, %v580
      %v582 = vpop.f32.mrb[0].mxu0
      %v583 = vpop.f32.mrb[0].mxu0
      %v584 = vadd.f32 0.0, %v583
      %v585 = vpop.f32.mrb[0].mxu0
      %586 = vmatprep.mubr.bf16.mxu0 0
      %587 = vmatmul.mubr.bf16.gmra.mrb[0].mxu0 %v477
      %v588 = vpop.f32.mrb[0].mxu0
      %v589 = vadd.f32 0.0, %v588
      %v590 = vpop.f32.mrb[0].mxu0
      %v591 = vpop.f32.mrb[0].mxu0
      %v592 = vadd.f32 0.0, %v591
      %v593 = vpop.f32.mrb[0].mxu0
      %594 = vmatprep.mubr.bf16.mxu0 0
      %595 = vmatmul.mubr.bf16.gmra.mrb[0].mxu0 %v480
      %v596 = vpop.f32.mrb[0].mxu0
      %v597 = vadd.f32 0.0, %v596
      %v598 = vpop.f32.mrb[0].mxu0
      %v599 = vpop.f32.mrb[0].mxu0
      %v600 = vadd.f32 0.0, %v599
      %v601 = vpop.f32.mrb[0].mxu0
      %602 = vmatprep.mubr.bf16.mxu0 0
      %603 = vmatmul.mubr.bf16.gmra.mrb[0].mxu0 %v483
      %v604 = vpop.f32.mrb[0].mxu0
      %v605 = vadd.f32 0.0, %v604
      %v606 = vpop.f32.mrb[0].mxu0
      %v607 = vpop.f32.mrb[0].mxu0
      %v608 = vadd.f32 0.0, %v607
      %v609 = vpop.f32.mrb[0].mxu0
      %610 = vmatprep.mubr.bf16.mxu0 0
      %611 = vmatmul.mubr.bf16.gmra.mrb[0].mxu0 %v486
      %v612 = vpop.f32.mrb[0].mxu0
      %v613 = vadd.f32 0.0, %v612
      %v614 = vpop.f32.mrb[0].mxu0
      %v615 = vpop.f32.mrb[0].mxu0
      %v616 = vadd.f32 0.0, %v615
      %v617 = vpop.f32.mrb[0].mxu0
      %618 = vmatprep.mubr.bf16.mxu0 0
      %619 = vmatmul.mubr.bf16.gmra.mrb[0].mxu0 %v489
      %v620 = vpop.f32.mrb[0].mxu0
      %v621 = vadd.f32 0.0, %v620
      %v622 = vpop.f32.mrb[0].mxu0
      %v623 = vpop.f32.mrb[0].mxu0
      %v624 = vadd.f32 0.0, %v623
      %v625 = vpop.f32.mrb[0].mxu0
      %626 = vmatprep.mubr.bf16.mxu0 0
      %627 = vmatmul.mubr.bf16.gmra.mrb[0].mxu0 %v492
      %v628 = vpop.f32.mrb[0].mxu0
      %v629 = vadd.f32 0.0, %v628
      %v630 = vpop.f32.mrb[0].mxu0
      %v631 = vpop.f32.mrb[0].mxu0
      %v632 = vadd.f32 0.0, %v631
      %v633 = vpop.f32.mrb[0].mxu0
      %634 = vmatprep.mubr.bf16.mxu0 0
      %635 = vmatmul.mubr.bf16.gmra.mrb[0].mxu0 %v495
      %v636 = vpop.f32.mrb[0].mxu0
      %v637 = vadd.f32 0.0, %v636
      %v638 = vpop.f32.mrb[0].mxu0
      %v639 = vpop.f32.mrb[0].mxu0
      %v640 = vadd.f32 0.0, %v639
      %v641 = vpop.f32.mrb[0].mxu0
      %642 = vmatprep.mubr.bf16.mxu0 0
      %643 = vmatmul.mubr.bf16.gmra.mrb[0].mxu0 %v498
      %v644 = vpop.f32.mrb[0].mxu0
      %v645 = vadd.f32 0.0, %v644
      %v646 = vpop.f32.mrb[0].mxu0
      %v647 = vpop.f32.mrb[0].mxu0
      %v648 = vadd.f32 0.0, %v647
      %v649 = vpop.f32.mrb[0].mxu0
      %650 = vmatprep.mubr.bf16.mxu0 0
      %651 = vmatmul.mubr.bf16.gmra.mrb[0].mxu0 %v501
      %v652 = vpop.f32.mrb[0].mxu0
      %v653 = vadd.f32 0.0, %v652
      %v654 = vpop.f32.mrb[0].mxu0
      %v655 = vpop.f32.mrb[0].mxu0
      %v656 = vadd.f32 0.0, %v655
      %v657 = vpop.f32.mrb[0].mxu0
      %658 = vmatprep.mubr.bf16.mxu0 0
      %659 = vmatmul.mubr.bf16.gmra.mrb[0].mxu0 %v504
      %v660 = vpop.f32.mrb[0].mxu0
      %v661 = vadd.f32 0.0, %v660
      %v662 = vpop.f32.mrb[0].mxu0
      %v663 = vpop.f32.mrb[0].mxu0
      %v664 = vadd.f32 0.0, %v663
      %v665 = vpop.f32.mrb[0].mxu0
      %666 = vdwg.mxu0
      %v667 = vadd.f32 %v297, %v541
      %v668 = vadd.f32 %v298, %v544
      %v669 = vadd.f32 %v299, %v549
      %v670 = vadd.f32 %v300, %v552
      %v671 = vadd.f32 %v301, %v557
      %v672 = vadd.f32 %v302, %v560
      %v673 = vadd.f32 %v303, %v565
      %v674 = vadd.f32 %v304, %v568
      %v675 = vadd.f32 %v305, %v573
      %v676 = vadd.f32 %v306, %v576
      %v677 = vadd.f32 %v307, %v581
      %v678 = vadd.f32 %v308, %v584
      %v679 = vadd.f32 %v309, %v589
      %v680 = vadd.f32 %v310, %v592
      %v681 = vadd.f32 %v311, %v597
      %v682 = vadd.f32 %v312, %v600
      %v683 = vadd.f32 %v313, %v605
      %v684 = vadd.f32 %v314, %v608
      %v685 = vadd.f32 %v315, %v613
      %v686 = vadd.f32 %v316, %v616
      %v687 = vadd.f32 %v317, %v621
      %v688 = vadd.f32 %v318, %v624
      %v689 = vadd.f32 %v319, %v629
      %v690 = vadd.f32 %v320, %v632
      %v691 = vadd.f32 %v321, %v637
      %v692 = vadd.f32 %v322, %v640
      %v693 = vadd.f32 %v323, %v645
      %v694 = vadd.f32 %v324, %v648
      %v695 = vadd.f32 %v325, %v653
      %v696 = vadd.f32 %v326, %v656
      %v697 = vadd.f32 %v327, %v661
      %v698 = vadd.f32 %v328, %v664
      %vm699 = vcmask 523264
      %700 = vst.msk [vmem:[#allocation2] sm:$0xff] %vm699, %v667
      %701 = vst.msk [vmem:[#allocation2 + $0x8] sm:$0xff] %vm699, %v668
      %702 = vst.msk [vmem:[#allocation2 + $0x10] sm:$0xff] %vm699, %v669
      %703 = vst.msk [vmem:[#allocation2 + $0x18] sm:$0xff] %vm699, %v670
      %704 = vst.msk [vmem:[#allocation2 + $0x20] sm:$0xff] %vm699, %v671
      %705 = vst.msk [vmem:[#allocation2 + $0x28] sm:$0xff] %vm699, %v672
      %706 = vst.msk [vmem:[#allocation2 + $0x30] sm:$0xff] %vm699, %v673
      %707 = vst.msk [vmem:[#allocation2 + $0x38] sm:$0xff] %vm699, %v674
      %708 = vst.msk [vmem:[#allocation2 + $0x40] sm:$0xff] %vm699, %v675
      %709 = vst.msk [vmem:[#allocation2 + $0x48] sm:$0xff] %vm699, %v676
      %710 = vst.msk [vmem:[#allocation2 + $0x50] sm:$0xff] %vm699, %v677
      %711 = vst.msk [vmem:[#allocation2 + $0x58] sm:$0xff] %vm699, %v678
      %712 = vst.msk [vmem:[#allocation2 + $0x60] sm:$0xff] %vm699, %v679
      %713 = vst.msk [vmem:[#allocation2 + $0x68] sm:$0xff] %vm699, %v680
      %714 = vst.msk [vmem:[#allocation2 + $0x70] sm:$0xff] %vm699, %v681
      %715 = vst.msk [vmem:[#allocation2 + $0x78] sm:$0xff] %vm699, %v682
      %716 = vst.msk [vmem:[#allocation2 + $0x80] sm:$0xff] %vm699, %v683
      %717 = vst.msk [vmem:[#allocation2 + $0x88] sm:$0xff] %vm699, %v684
      %718 = vst.msk [vmem:[#allocation2 + $0x90] sm:$0xff] %vm699, %v685
      %719 = vst.msk [vmem:[#allocation2 + $0x98] sm:$0xff] %vm699, %v686
      %720 = vst.msk [vmem:[#allocation2 + $0xa0] sm:$0xff] %vm699, %v687
      %721 = vst.msk [vmem:[#allocation2 + $0xa8] sm:$0xff] %vm699, %v688
      %722 = vst.msk [vmem:[#allocation2 + $0xb0] sm:$0xff] %vm699, %v689
      %723 = vst.msk [vmem:[#allocation2 + $0xb8] sm:$0xff] %vm699, %v690
      %724 = vst.msk [vmem:[#allocation2 + $0xc0] sm:$0xff] %vm699, %v691
      %725 = vst.msk [vmem:[#allocation2 + $0xc8] sm:$0xff] %vm699, %v692
      %726 = vst.msk [vmem:[#allocation2 + $0xd0] sm:$0xff] %vm699, %v693
      %727 = vst.msk [vmem:[#allocation2 + $0xd8] sm:$0xff] %vm699, %v694
      %728 = vst.msk [vmem:[#allocation2 + $0xe0] sm:$0xff] %vm699, %v695
      %729 = vst.msk [vmem:[#allocation2 + $0xe8] sm:$0xff] %vm699, %v696
      %730 = vst.msk [vmem:[#allocation2 + $0xf0] sm:$0xff] %vm699, %v697
      %731 = vst.msk [vmem:[#allocation2 + $0xf8] sm:$0xff] %vm699, %v698
      // Predicated region
      $region37: #{tpu_custom_call.1} parent=31 // pred_check
        %p732 = pneg %p260
      $region38: #{tpu_custom_call.1} parent=31 // pred_check_branch
        %734 = sbr.rel (%p732) target = $region40
      $region39: #{tpu_custom_call.1} parent=31 // pred_region
        %v735 = vld [vmem:[#allocation2] sm:$0xff]
        %v736 = vld [vmem:[#allocation2 + $0x8] sm:$0xff]
        %v737 = vld [vmem:[#allocation2 + $0x10] sm:$0xff]
        %v738 = vld [vmem:[#allocation2 + $0x18] sm:$0xff]
        %v739 = vld [vmem:[#allocation2 + $0x20] sm:$0xff]
        %v740 = vld [vmem:[#allocation2 + $0x28] sm:$0xff]
        %v741 = vld [vmem:[#allocation2 + $0x30] sm:$0xff]
        %v742 = vld [vmem:[#allocation2 + $0x38] sm:$0xff]
        %v743 = vld [vmem:[#allocation2 + $0x40] sm:$0xff]
        %v744 = vld [vmem:[#allocation2 + $0x48] sm:$0xff]
        %v745 = vld [vmem:[#allocation2 + $0x50] sm:$0xff]
        %v746 = vld [vmem:[#allocation2 + $0x58] sm:$0xff]
        %v747 = vld [vmem:[#allocation2 + $0x60] sm:$0xff]
        %v748 = vld [vmem:[#allocation2 + $0x68] sm:$0xff]
        %v749 = vld [vmem:[#allocation2 + $0x70] sm:$0xff]
        %v750 = vld [vmem:[#allocation2 + $0x78] sm:$0xff]
        %v751 = vld [vmem:[#allocation2 + $0x80] sm:$0xff]
        %v752 = vld [vmem:[#allocation2 + $0x88] sm:$0xff]
        %v753 = vld [vmem:[#allocation2 + $0x90] sm:$0xff]
        %v754 = vld [vmem:[#allocation2 + $0x98] sm:$0xff]
        %v755 = vld [vmem:[#allocation2 + $0xa0] sm:$0xff]
        %v756 = vld [vmem:[#allocation2 + $0xa8] sm:$0xff]
        %v757 = vld [vmem:[#allocation2 + $0xb0] sm:$0xff]
        %v758 = vld [vmem:[#allocation2 + $0xb8] sm:$0xff]
        %v759 = vld [vmem:[#allocation2 + $0xc0] sm:$0xff]
        %v760 = vld [vmem:[#allocation2 + $0xc8] sm:$0xff]
        %v761 = vld [vmem:[#allocation2 + $0xd0] sm:$0xff]
        %v762 = vld [vmem:[#allocation2 + $0xd8] sm:$0xff]
        %v763 = vld [vmem:[#allocation2 + $0xe0] sm:$0xff]
        %v764 = vld [vmem:[#allocation2 + $0xe8] sm:$0xff]
        %v765 = vld [vmem:[#allocation2 + $0xf0] sm:$0xff]
        %v766 = vld [vmem:[#allocation2 + $0xf8] sm:$0xff]
        %v767 = vld [vmem:[%s249] sm:$0x1]
        %v769 = vlaneseq
        %v770 = vshrl.u32 %v769, 7
        %v771 = vsub.s32 0, %v770
        %v772 = vrot.slane %v767, %v771
        %v774 = vadd.f32 %v735, %v772
        %v775 = vadd.f32 %v736, %v772
        %v776 = vadd.f32 %v737, %v772
        %v777 = vadd.f32 %v738, %v772
        %v778 = vadd.f32 %v739, %v772
        %v779 = vadd.f32 %v740, %v772
        %v780 = vadd.f32 %v741, %v772
        %v781 = vadd.f32 %v742, %v772
        %v782 = vadd.f32 %v743, %v772
        %v783 = vadd.f32 %v744, %v772
        %v784 = vadd.f32 %v745, %v772
        %v785 = vadd.f32 %v746, %v772
        %v786 = vadd.f32 %v747, %v772
        %v787 = vadd.f32 %v748, %v772
        %v788 = vadd.f32 %v749, %v772
        %v789 = vadd.f32 %v750, %v772
        %v790 = vadd.f32 %v751, %v772
        %v791 = vadd.f32 %v752, %v772
        %v792 = vadd.f32 %v753, %v772
        %v793 = vadd.f32 %v754, %v772
        %v794 = vadd.f32 %v755, %v772
        %v795 = vadd.f32 %v756, %v772
        %v796 = vadd.f32 %v757, %v772
        %v797 = vadd.f32 %v758, %v772
        %v798 = vadd.f32 %v759, %v772
        %v799 = vadd.f32 %v760, %v772
        %v800 = vadd.f32 %v761, %v772
        %v801 = vadd.f32 %v762, %v772
        %v802 = vadd.f32 %v763, %v772
        %v803 = vadd.f32 %v764, %v772
        %v804 = vadd.f32 %v765, %v772
        %v805 = vadd.f32 %v766, %v772
        %v806 = vmax.f32 %v774, 0.0
        %v807 = vmax.f32 %v775, 0.0
        %v808 = vmax.f32 %v776, 0.0
        %v809 = vmax.f32 %v777, 0.0
        %v810 = vmax.f32 %v778, 0.0
        %v811 = vmax.f32 %v779, 0.0
        %v812 = vmax.f32 %v780, 0.0
        %v813 = vmax.f32 %v781, 0.0
        %v814 = vmax.f32 %v782, 0.0
        %v815 = vmax.f32 %v783, 0.0
        %v816 = vmax.f32 %v784, 0.0
        %v817 = vmax.f32 %v785, 0.0
        %v818 = vmax.f32 %v786, 0.0
        %v819 = vmax.f32 %v787, 0.0
        %v820 = vmax.f32 %v788, 0.0
        %v821 = vmax.f32 %v789, 0.0
        %v822 = vmax.f32 %v790, 0.0
        %v823 = vmax.f32 %v791, 0.0
        %v824 = vmax.f32 %v792, 0.0
        %v825 = vmax.f32 %v793, 0.0
        %v826 = vmax.f32 %v794, 0.0
        %v827 = vmax.f32 %v795, 0.0
        %v828 = vmax.f32 %v796, 0.0
        %v829 = vmax.f32 %v797, 0.0
        %v830 = vmax.f32 %v798, 0.0
        %v831 = vmax.f32 %v799, 0.0
        %v832 = vmax.f32 %v800, 0.0
        %v833 = vmax.f32 %v801, 0.0
        %v834 = vmax.f32 %v802, 0.0
        %v835 = vmax.f32 %v803, 0.0
        %v836 = vmax.f32 %v804, 0.0
        %v837 = vmax.f32 %v805, 0.0
        %v838 = vpack.c.bf16 %v807, %v806
        %v839 = vpack.c.bf16 %v809, %v808
        %v840 = vpack.c.bf16 %v811, %v810
        %v841 = vpack.c.bf16 %v813, %v812
        %v842 = vpack.c.bf16 %v815, %v814
        %v843 = vpack.c.bf16 %v817, %v816
        %v844 = vpack.c.bf16 %v819, %v818
        %v845 = vpack.c.bf16 %v821, %v820
        %v846 = vpack.c.bf16 %v823, %v822
        %v847 = vpack.c.bf16 %v825, %v824
        %v848 = vpack.c.bf16 %v827, %v826
        %v849 = vpack.c.bf16 %v829, %v828
        %v850 = vpack.c.bf16 %v831, %v830
        %v851 = vpack.c.bf16 %v833, %v832
        %v852 = vpack.c.bf16 %v835, %v834
        %v853 = vpack.c.bf16 %v837, %v836
        %v870 = vunpack.c.l.b16 %v838
        %v871 = vunpack.c.h.b16 %v838
        %v872 = vunpack.c.l.b16 %v839
        %v873 = vunpack.c.h.b16 %v839
        %v874 = vunpack.c.l.b16 %v840
        %v875 = vunpack.c.h.b16 %v840
        %v876 = vunpack.c.l.b16 %v841
        %v877 = vunpack.c.h.b16 %v841
        %v878 = vunpack.c.l.b16 %v842
        %v879 = vunpack.c.h.b16 %v842
        %v880 = vunpack.c.l.b16 %v843
        %v881 = vunpack.c.h.b16 %v843
        %v882 = vunpack.c.l.b16 %v844
        %v883 = vunpack.c.h.b16 %v844
        %v884 = vunpack.c.l.b16 %v845
        %v885 = vunpack.c.h.b16 %v845
        %v886 = vunpack.c.l.b16 %v846
        %v887 = vunpack.c.h.b16 %v846
        %v888 = vunpack.c.l.b16 %v847
        %v889 = vunpack.c.h.b16 %v847
        %v890 = vunpack.c.l.b16 %v848
        %v891 = vunpack.c.h.b16 %v848
        %v892 = vunpack.c.l.b16 %v849
        %v893 = vunpack.c.h.b16 %v849
        %v894 = vunpack.c.l.b16 %v850
        %v895 = vunpack.c.h.b16 %v850
        %v896 = vunpack.c.l.b16 %v851
        %v897 = vunpack.c.h.b16 %v851
        %v898 = vunpack.c.l.b16 %v852
        %v899 = vunpack.c.h.b16 %v852
        %v900 = vunpack.c.l.b16 %v853
        %v901 = vunpack.c.h.b16 %v853
        %v902 = vpack.c.b16 %v870, %v870
        %v903 = vpack.c.b16 %v871, %v871
        %v904 = vpack.c.b16 %v872, %v872
        %v905 = vpack.c.b16 %v873, %v873
        %v906 = vpack.c.b16 %v874, %v874
        %v907 = vpack.c.b16 %v875, %v875
        %v908 = vpack.c.b16 %v876, %v876
        %v909 = vpack.c.b16 %v877, %v877
        %v910 = vpack.c.b16 %v878, %v878
        %v911 = vpack.c.b16 %v879, %v879
        %v912 = vpack.c.b16 %v880, %v880
        %v913 = vpack.c.b16 %v881, %v881
        %v914 = vpack.c.b16 %v882, %v882
        %v915 = vpack.c.b16 %v883, %v883
        %v916 = vpack.c.b16 %v884, %v884
        %v917 = vpack.c.b16 %v885, %v885
        %v918 = vpack.c.b16 %v886, %v886
        %v919 = vpack.c.b16 %v887, %v887
        %v920 = vpack.c.b16 %v888, %v888
        %v921 = vpack.c.b16 %v889, %v889
        %v922 = vpack.c.b16 %v890, %v890
        %v923 = vpack.c.b16 %v891, %v891
        %v924 = vpack.c.b16 %v892, %v892
        %v925 = vpack.c.b16 %v893, %v893
        %v926 = vpack.c.b16 %v894, %v894
        %v927 = vpack.c.b16 %v895, %v895
        %v928 = vpack.c.b16 %v896, %v896
        %v929 = vpack.c.b16 %v897, %v897
        %v930 = vpack.c.b16 %v898, %v898
        %v931 = vpack.c.b16 %v899, %v899
        %v932 = vpack.c.b16 %v900, %v900
        %v933 = vpack.c.b16 %v901, %v901
        %vm966 = vcmask 519168
        %967 = vst.msk [vmem:[%s257] sm:$0xf] %vm966, %v902
        %968 = vst.msk [vmem:[%s257 + $0x4] sm:$0xf] %vm966, %v903
        %969 = vst.msk [vmem:[%s257 + $0x8] sm:$0xf] %vm966, %v904
        %970 = vst.msk [vmem:[%s257 + $0xc] sm:$0xf] %vm966, %v905
        %971 = vst.msk [vmem:[%s257 + $0x10] sm:$0xf] %vm966, %v906
        %972 = vst.msk [vmem:[%s257 + $0x14] sm:$0xf] %vm966, %v907
        %973 = vst.msk [vmem:[%s257 + $0x18] sm:$0xf] %vm966, %v908
        %974 = vst.msk [vmem:[%s257 + $0x1c] sm:$0xf] %vm966, %v909
        %975 = vst.msk [vmem:[%s257 + $0x20] sm:$0xf] %vm966, %v910
        %976 = vst.msk [vmem:[%s257 + $0x24] sm:$0xf] %vm966, %v911
        %977 = vst.msk [vmem:[%s257 + $0x28] sm:$0xf] %vm966, %v912
        %978 = vst.msk [vmem:[%s257 + $0x2c] sm:$0xf] %vm966, %v913
        %979 = vst.msk [vmem:[%s257 + $0x30] sm:$0xf] %vm966, %v914
        %980 = vst.msk [vmem:[%s257 + $0x34] sm:$0xf] %vm966, %v915
        %981 = vst.msk [vmem:[%s257 + $0x38] sm:$0xf] %vm966, %v916
        %982 = vst.msk [vmem:[%s257 + $0x3c] sm:$0xf] %vm966, %v917
        %983 = vst.msk [vmem:[%s257 + $0x40] sm:$0xf] %vm966, %v918
        %984 = vst.msk [vmem:[%s257 + $0x44] sm:$0xf] %vm966, %v919
        %985 = vst.msk [vmem:[%s257 + $0x48] sm:$0xf] %vm966, %v920
        %986 = vst.msk [vmem:[%s257 + $0x4c] sm:$0xf] %vm966, %v921
        %987 = vst.msk [vmem:[%s257 + $0x50] sm:$0xf] %vm966, %v922
        %988 = vst.msk [vmem:[%s257 + $0x54] sm:$0xf] %vm966, %v923
        %989 = vst.msk [vmem:[%s257 + $0x58] sm:$0xf] %vm966, %v924
        %990 = vst.msk [vmem:[%s257 + $0x5c] sm:$0xf] %vm966, %v925
        %991 = vst.msk [vmem:[%s257 + $0x60] sm:$0xf] %vm966, %v926
        %992 = vst.msk [vmem:[%s257 + $0x64] sm:$0xf] %vm966, %v927
        %993 = vst.msk [vmem:[%s257 + $0x68] sm:$0xf] %vm966, %v928
        %994 = vst.msk [vmem:[%s257 + $0x6c] sm:$0xf] %vm966, %v929
        %995 = vst.msk [vmem:[%s257 + $0x70] sm:$0xf] %vm966, %v930
        %996 = vst.msk [vmem:[%s257 + $0x74] sm:$0xf] %vm966, %v931
        %997 = vst.msk [vmem:[%s257 + $0x78] sm:$0xf] %vm966, %v932
        %998 = vst.msk [vmem:[%s257 + $0x7c] sm:$0xf] %vm966, %v933
      $region40: #{tpu_custom_call.1} parent=31 // pred_fallthru
        _
      %s999 = smul.u32 32, %s19
      %p1000 = scmp.lt.s32.totalorder %s999, 63
      %s1001 = scalar_select %p1000, %s999, 63
      %p1002 = scmp.lt.s32.totalorder %s20, 0
      %s1003 = scalar_select %p1002, %s20, 0
      %s1004 = sadd.s32 %s1003, %s1001
      %s1005 = smul.addr %s1004, 4
      %s1006 = scalar_lea.vmem %s3, %s1005
      // Predicated region
      $region41: #{tpu_custom_call.1} parent=31 // pred_check
        %p1007 = pneg %p135
      $region42: #{tpu_custom_call.1} parent=31 // pred_check_branch
        %1009 = sbr.rel (%p1007) target = $region44
      $region43: #{tpu_custom_call.1} parent=31 // pred_region
        %s1010 = smul.u32 32, %s19
      $region44: #{tpu_custom_call.1} parent=31 // pred_fallthru
        _
    $region32: #{tpu_custom_call.1} parent=5 // pred_fallthru
      _
    %p1011 = scmp.le.s32.totalorder 2, %s9
    // Predicated region
    $region45: #{tpu_custom_call.1} parent=5 // pred_check
      %p1012 = pneg %p1011
    $region46: #{tpu_custom_call.1} parent=5 // pred_check_branch
      %1014 = sbr.rel (%p1012) target = $region48
    $region47: #{tpu_custom_call.1} parent=5 // pred_region
      %s1015 = ssub.s32 %s9, 2
      // Predicated region
      $region49: #{tpu_custom_call.1} parent=47 // pred_check
        %p1016 = pneg %p141
      $region50: #{tpu_custom_call.1} parent=47 // pred_check_branch
        %1018 = sbr.rel (%p1016) target = $region52
      $region51: #{tpu_custom_call.1} parent=47 // pred_region
        %s1019 = smul.u32 32, %s22
        %p1020 = scmp.lt.s32.totalorder %s1019, 63
        %s1021 = scalar_select %p1020, %s1019, 63
        %p1022 = scmp.lt.s32.totalorder %s23, 0
        %s1023 = scalar_select %p1022, %s23, 0
        %s1024 = sadd.s32 %s1023, %s1021
        %s1025 = smul.addr %s1024, 4
        %s1026 = scalar_lea.vmem %s3, %s1025
      $region52: #{tpu_custom_call.1} parent=47 // pred_fallthru
        _
    $region48: #{tpu_custom_call.1} parent=5 // pred_fallthru
      _
  $region6: #{tpu_custom_call.1} parent=0 // loop_footer
    %s13 = sadd.s32 1, %s9
  $region7: #{tpu_custom_call.1} parent=0 // loop_footer_branch
    %8 = sbr.rel target = $region3
  $region8: #{tpu_custom_call.1} parent=0 // loop_exit
    _

</llo_original>
